<compile_context>
chip_gen: v5e
topology: v5e:2x2
jax: 0.10.0
libtpu: 0.0.40
codegen_flags: <defaults>
</compile_context>

<pallas_src>
import jax
import jax.numpy as jnp
from jax.experimental import pallas as pl
from jax.experimental.pallas import tpu as pltpu


def _qmlp_kernel(x_ref, a_ref, w1x_ref, w1a_ref, b1_ref, w2t_ref, b2_ref, o_ref):
    # fc1 on the MXU, f32 accumulation, split over the (obs | act) halves of
    # the weight so the wrapper never materializes a concat buffer.
    h = jnp.dot(x_ref[...], w1x_ref[...], preferred_element_type=jnp.float32)
    h = h + jnp.dot(a_ref[...], w1a_ref[...], preferred_element_type=jnp.float32)
    h = jnp.maximum(h + b1_ref[...], 0.0)                   # bias + ReLU (VPU)
    # fc3 (width -> 1): VPU multiply + XLU lane reduction against w2^T.
    q = jnp.sum(h * w2t_ref[...], axis=-1, keepdims=True)   # [tb, 1]
    o_ref[...] = (q + b2_ref[0]).astype(o_ref.dtype)        # b2 from SMEM scalar


def prepare_params(w1, b1, w2, b2, observation_space):
    """One-time parameter prep (hoisted out of the per-call hot path).

    w1: [obs+act, width], b1: [width], w2: [width, 1], b2: [1]
    """
    width = w1.shape[1]
    w1 = w1.astype(jnp.float32)
    return {
        "w1x": w1[:observation_space],              # [obs, width]
        "w1a": w1[observation_space:],              # [act, width]
        "b1": b1.reshape(1, width).astype(jnp.float32),   # lane-dense bias row
        "w2t": w2.reshape(1, width).astype(jnp.float32),  # fc3 weight^T, lane-dense
        "b2": b2.reshape(1).astype(jnp.float32),          # scalar, lives in SMEM
    }


def _round_up(n, m):
    return pl.cdiv(n, m) * m


def _vmem_bytes(tb, obs, act, width):
    """Padded-lane VMEM footprint estimate (f32)."""
    lane = 128
    pad_l = lambda n: _round_up(n, lane)
    in_bytes = tb * (pad_l(obs) + pad_l(act)) * 4 * 2          # 2x double-buffered inputs
    h_bytes = tb * pad_l(width) * 4 * 2                        # intermediate + temporaries
    out_bytes = tb * lane * 4 * 2                              # [tb,1] pads to 128 lanes
    w_bytes = (_round_up(obs, 8) + _round_up(act, 8) + 16) * pad_l(width) * 4
    return in_bytes + h_bytes + out_bytes + w_bytes


def q_mlp_forward(x, a, params, *, tb=4096):
    """x: [B, obs], a: [B, act] -> [B, 1] (float32)."""
    B, obs = x.shape
    act = a.shape[1]
    width = params["w1x"].shape[1]

    x = x.astype(jnp.float32)
    a = a.astype(jnp.float32)

    # Batch tile: multiple of 8 sublanes.  Small batches collapse to a single
    # (full-extent) block; large batches keep >= 2 tiles so the "parallel"
    # axis can shard across both TensorCores on v7x.
    tb = max(8, min(tb, _round_up(B, 8)))
    if B > 2048:
        tb = min(tb, _round_up(pl.cdiv(B, 2), 8))
    num_tiles = pl.cdiv(B, tb)   # partial final block is masked by Pallas

    vmem_limit = int(min(max(_vmem_bytes(tb, obs, act, width) + (8 << 20), 32 << 20),
                         48 << 20))

    out = pl.pallas_call(
        _qmlp_kernel,
        out_shape=jax.ShapeDtypeStruct((B, 1), jnp.float32),
        grid=(num_tiles,),
        in_specs=[
            # Activations: batch-tiled, auto double-buffered across the grid.
            pl.BlockSpec((tb, obs), lambda i: (i, 0)),
            pl.BlockSpec((tb, act), lambda i: (i, 0)),
            # Weights/biases: constant block index -> stay VMEM-resident.
            pl.BlockSpec((obs, width), lambda i: (0, 0)),
            pl.BlockSpec((act, width), lambda i: (0, 0)),
            pl.BlockSpec((1, width), lambda i: (0, 0)),
            pl.BlockSpec((1, width), lambda i: (0, 0)),
            # b2 scalar on the scalar path.
            pl.BlockSpec(memory_space=pltpu.SMEM),
        ],
        out_specs=pl.BlockSpec((tb, 1), lambda i: (i, 0)),
        compiler_params=pltpu.CompilerParams(
            # Shard batch tiles across TensorCores (2x on v7x megacore).
            dimension_semantics=("parallel",),
            vmem_limit_bytes=vmem_limit,
        ),
    )(x, a, params["w1x"], params["w1a"], params["b1"], params["w2t"], params["b2"])

    return out


def init_params(key, obs, act, width=256):
    """Deterministic init mimicking nn.Linear (uniform +/- 1/sqrt(fan_in))."""
    k1, k2, k3, k4 = jax.random.split(key, 4)
    fan1 = obs + act
    lim1 = 1.0 / jnp.sqrt(jnp.float32(fan1))
    w1 = jax.random.uniform(k1, (fan1, width), jnp.float32, -lim1, lim1)
    b1 = jax.random.uniform(k2, (width,), jnp.float32, -lim1, lim1)
    lim2 = 1.0 / jnp.sqrt(jnp.float32(width))
    w2 = jax.random.uniform(k3, (width, 1), jnp.float32, -lim2, lim2)
    b2 = jax.random.uniform(k4, (1,), jnp.float32, -lim2, lim2)
    return w1, b1, w2, b2


if __name__ == "__main__":
    key = jax.random.PRNGKey(0)
    kx, ka, kp, kx2, ka2 = jax.random.split(key, 5)

    # Small shapes consistent with the module.
    B, OBS, ACT, WIDTH = 8, 16, 8, 32
    x = jax.random.normal(kx, (B, OBS), jnp.float32)
    a = jax.random.normal(ka, (B, ACT), jnp.float32)
    w1, b1, w2, b2 = init_params(kp, OBS, ACT, WIDTH)
    params = prepare_params(w1, b1, w2, b2, OBS)

    def ref_fwd(xv, av):
        xa = jnp.concatenate([xv, av], axis=1)
        return jnp.maximum(xa @ w1 + b1, 0.0) @ w2 + b2

    # Single-tile path (B collapses to one full-extent block).
    out = jax.block_until_ready(q_mlp_forward(x, a, params))
    ref = ref_fwd(x, a)
    assert out.shape == (B, 1)
    assert jnp.allclose(out, ref, atol=1e-4, rtol=1e-4)

    # Multi-tile path: exercises the parallel batch grid and the masked
    # partial final block (300 = 2*128 + 44) without any wrapper-side pad.
    B2 = 300
    x2 = jax.random.normal(kx2, (B2, OBS), jnp.float32)
    a2 = jax.random.normal(ka2, (B2, ACT), jnp.float32)
    out2 = jax.block_until_ready(q_mlp_forward(x2, a2, params, tb=128))
    ref2 = ref_fwd(x2, a2)
    assert out2.shape == (B2, 1)
    assert jnp.allclose(out2, ref2, atol=1e-4, rtol=1e-4)

    print("KERNEL_OK")
</pallas_src>

<mosaic_0001>
module attributes {stable_mosaic.version = 11 : i64} {
  func.func @_qmlp_kernel(%arg0: i32, %arg1: memref<8x16xf32, #tpu.memory_space<vmem>>, %arg2: memref<8x8xf32, #tpu.memory_space<vmem>>, %arg3: memref<16x32xf32, #tpu.memory_space<vmem>>, %arg4: memref<8x32xf32, #tpu.memory_space<vmem>>, %arg5: memref<1x32xf32, #tpu.memory_space<vmem>>, %arg6: memref<1x32xf32, #tpu.memory_space<vmem>>, %arg7: memref<1xf32, #tpu.memory_space<smem>>, %arg8: memref<8x1xf32, #tpu.memory_space<vmem>>) attributes {dimension_semantics = [#tpu.dimension_semantics<parallel>], iteration_bounds = array<i64: 1>, scalar_prefetch = 0 : i64, scratch_operands = 0 : i64, tpu.core_type = #tpu.core_type<tc>, window_params = [{transform_indices = @transform_0, window_bounds = array<i64: 8, 16>}, {transform_indices = @transform_1, window_bounds = array<i64: 8, 8>}, {pipeline_mode = #tpu.pipeline_mode<synchronous>, transform_indices = @transform_2, window_bounds = array<i64: 16, 32>}, {pipeline_mode = #tpu.pipeline_mode<synchronous>, transform_indices = @transform_3, window_bounds = array<i64: 8, 32>}, {pipeline_mode = #tpu.pipeline_mode<synchronous>, transform_indices = @transform_4, window_bounds = array<i64: 1, 32>}, {pipeline_mode = #tpu.pipeline_mode<synchronous>, transform_indices = @transform_5, window_bounds = array<i64: 1, 32>}, {transform_indices = @transform_6, window_bounds = array<i64: 1>}, {transform_indices = @transform_7, window_bounds = array<i64: 8, 1>}]} {
    %c0 = arith.constant 0 : index
    %c0_0 = arith.constant 0 : index
    %0 = vector.load %arg1[%c0, %c0_0] : memref<8x16xf32, #tpu.memory_space<vmem>>, vector<8x16xf32>
    %c0_1 = arith.constant 0 : index
    %c0_2 = arith.constant 0 : index
    %1 = vector.load %arg3[%c0_1, %c0_2] : memref<16x32xf32, #tpu.memory_space<vmem>>, vector<16x32xf32>
    %cst = arith.constant dense<0.000000e+00> : vector<8x32xf32>
    %2 = tpu.matmul %0, %1, %cst {dimension_numbers = #tpu.dot_dimension_numbers<[1], [0], [0], [1], [0, 0, 1, 1], [], []>} : vector<8x16xf32>, vector<16x32xf32>, vector<8x32xf32> -> vector<8x32xf32>
    %c0_3 = arith.constant 0 : index
    %c0_4 = arith.constant 0 : index
    %3 = vector.load %arg2[%c0_3, %c0_4] : memref<8x8xf32, #tpu.memory_space<vmem>>, vector<8x8xf32>
    %c0_5 = arith.constant 0 : index
    %c0_6 = arith.constant 0 : index
    %4 = vector.load %arg4[%c0_5, %c0_6] : memref<8x32xf32, #tpu.memory_space<vmem>>, vector<8x32xf32>
    %cst_7 = arith.constant dense<0.000000e+00> : vector<8x32xf32>
    %5 = tpu.matmul %3, %4, %cst_7 {dimension_numbers = #tpu.dot_dimension_numbers<[1], [0], [0], [1], [0, 0, 1, 1], [], []>} : vector<8x8xf32>, vector<8x32xf32>, vector<8x32xf32> -> vector<8x32xf32>
    %6 = arith.addf %2, %5 : vector<8x32xf32>
    %c0_8 = arith.constant 0 : index
    %c0_9 = arith.constant 0 : index
    %7 = vector.load %arg5[%c0_8, %c0_9] : memref<1x32xf32, #tpu.memory_space<vmem>>, vector<1x32xf32>
    %8 = vector.broadcast %7 : vector<1x32xf32> to vector<8x32xf32>
    %9 = arith.addf %6, %8 : vector<8x32xf32>
    %cst_10 = arith.constant 0.000000e+00 : f32
    %10 = vector.broadcast %cst_10 : f32 to vector<8x32xf32>
    %11 = arith.maximumf %9, %10 : vector<8x32xf32>
    %c0_11 = arith.constant 0 : index
    %c0_12 = arith.constant 0 : index
    %12 = vector.load %arg6[%c0_11, %c0_12] : memref<1x32xf32, #tpu.memory_space<vmem>>, vector<1x32xf32>
    %13 = vector.broadcast %12 : vector<1x32xf32> to vector<8x32xf32>
    %14 = arith.mulf %11, %13 : vector<8x32xf32>
    %cst_13 = arith.constant dense<0.000000e+00> : vector<8xf32>
    %15 = vector.multi_reduction <add>, %14, %cst_13 [1] : vector<8x32xf32> to vector<8xf32>
    %16 = vector.shape_cast %15 : vector<8xf32> to vector<8x1xf32>
    %c0_14 = arith.constant 0 : index
    %17 = memref.load %arg7[%c0_14] : memref<1xf32, #tpu.memory_space<smem>>
    %18 = vector.broadcast %17 : f32 to vector<8x1xf32>
    %19 = arith.addf %16, %18 : vector<8x1xf32>
    %c0_15 = arith.constant 0 : index
    %c0_16 = arith.constant 0 : index
    %20 = vector.load %arg8[%c0_15, %c0_16] : memref<8x1xf32, #tpu.memory_space<vmem>>, vector<8x1xf32>
    tpu.vector_store %arg8[%c0_15, %c0_16], %19 {strides = array<i32>} : memref<8x1xf32, #tpu.memory_space<vmem>>, vector<8x1xf32>,
    return
  }
  func.func @transform_0(%arg0: i32) -> (i32, i32) {
    %c0_i32 = arith.constant 0 : i32
    %c0_i32_0 = arith.constant 0 : i32
    return %arg0, %c0_i32 : i32, i32
  }
  func.func @transform_1(%arg0: i32) -> (i32, i32) {
    %c0_i32 = arith.constant 0 : i32
    %c0_i32_0 = arith.constant 0 : i32
    return %arg0, %c0_i32 : i32, i32
  }
  func.func @transform_2(%arg0: i32) -> (i32, i32) {
    %c0_i32 = arith.constant 0 : i32
    %c0_i32_0 = arith.constant 0 : i32
    %c0_i32_1 = arith.constant 0 : i32
    return %c0_i32, %c0_i32_0 : i32, i32
  }
  func.func @transform_3(%arg0: i32) -> (i32, i32) {
    %c0_i32 = arith.constant 0 : i32
    %c0_i32_0 = arith.constant 0 : i32
    %c0_i32_1 = arith.constant 0 : i32
    return %c0_i32, %c0_i32_0 : i32, i32
  }
  func.func @transform_4(%arg0: i32) -> (i32, i32) {
    %c0_i32 = arith.constant 0 : i32
    %c0_i32_0 = arith.constant 0 : i32
    %c0_i32_1 = arith.constant 0 : i32
    return %c0_i32, %c0_i32_0 : i32, i32
  }
  func.func @transform_5(%arg0: i32) -> (i32, i32) {
    %c0_i32 = arith.constant 0 : i32
    %c0_i32_0 = arith.constant 0 : i32
    %c0_i32_1 = arith.constant 0 : i32
    return %c0_i32, %c0_i32_0 : i32, i32
  }
  func.func @transform_6(%arg0: i32) -> i32 {
    %c0_i32 = arith.constant 0 : i32
    %c0_i32_0 = arith.constant 0 : i32
    return %c0_i32 : i32
  }
  func.func @transform_7(%arg0: i32) -> (i32, i32) {
    %c0_i32 = arith.constant 0 : i32
    %c0_i32_0 = arith.constant 0 : i32
    return %arg0, %c0_i32 : i32, i32
  }
}

</mosaic_0001>

<llo_original>
// kernel: tpu_custom_call.1
$region0: #{tpu_custom_call.1}
  #allocation0 [shape = 'u32[]', space=smem, size = 0x4, offset = 0x4, fixed_abs, tag = 'smem constant byte address 0x4 - core index']
  #allocation1 [shape = 'u32[72,128]{1,0:T(1,128)}', space=vmem, size = 0x9000, scoped, tag = 'internal scratch']
  #allocation2 [shape = 'f32[1]{0:T(128)S(6)}', space=smem, size = 0x200, scoped, tag = 'scoped memory for tpu_custom_call.1']
  %s0 = inlined_call_operand.hbm [shape: f32[8,16], index: 0, kind: input, shape index: {}]
  %s1 = inlined_call_operand.hbm [shape: f32[8,8], index: 1, kind: input, shape index: {}]
  %s2 = inlined_call_operand.hbm [shape: f32[16,32], index: 2, kind: input, shape index: {}]
  %s3 = inlined_call_operand.hbm [shape: f32[8,32], index: 3, kind: input, shape index: {}]
  %s4 = inlined_call_operand.vmem [shape: f32[1,32], index: 4, kind: input, shape index: {}]
  %s5 = inlined_call_operand.vmem [shape: f32[1,32], index: 5, kind: input, shape index: {}]
  %s6 = inlined_call_operand.<no memory space> [shape: f32[1], index: 6, kind: input, shape index: {}]
  %s7 = inlined_call_operand.vmem [shape: f32[8,1], index: 7, kind: output, shape index: {}]
  %s8 = sld [smem:[#allocation0]]
  $region54: #{tpu_custom_call.1} parent=0
    _
  %s10 = ssub.s32 1, %s8
  %s11 = scalar_select 0, %s10, %s8
  %12 = sst [smem:[#allocation2]] %s6
  $region1: #{tpu_custom_call.1} parent=0
    #allocation3 [shape = 'u8[4096]{0}', space=vmem, size = 0x1000, scoped, tag = 'input window, operand 0, single buffered']
    #allocation4 [shape = 's32[1]{0}', space=sflag, size = 0x4, scoped, tag = 'scoped memory for tpu_custom_call.1']
    #allocation5 [shape = 'u8[4096]{0}', space=vmem, size = 0x1000, scoped, tag = 'input window, operand 1, single buffered']
    #allocation6 [shape = 's32[1]{0}', space=sflag, size = 0x4, scoped, tag = 'scoped memory for tpu_custom_call.1']
    #allocation7 [shape = 'u8[8192]{0}', space=vmem, size = 0x2000, scoped, tag = 'input window, operand 2, single buffered']
    #allocation8 [shape = 'u8[4096]{0}', space=vmem, size = 0x1000, scoped, tag = 'input window, operand 3, single buffered']
    #allocation9 [shape = 's32[1]{0}', space=sflag, size = 0x4, scoped, tag = 'scoped memory for tpu_custom_call.1']
    %13 = vsyncpa [#allocation4], 0
    %14 = vsyncpa [#allocation6], 0
    %15 = vsyncpa [#allocation9], 0
    // Predicated region
    $region2: #{tpu_custom_call.1} parent=1 // pred_check
      _
    $region3: #{tpu_custom_call.1} parent=1 // pred_check_branch
      %17 = sbr.rel (0) target = $region5
    $region4: #{tpu_custom_call.1} parent=1 // pred_region
      %19 = vsyncadd [#allocation4], 0
      %s21 = sshll.u32 %s0, 4
      %s22 = int_to_ptr.hbm [resolvable:$true] %s21
      %s23 = sshll.u32 [#allocation3], 4
      %s24 = int_to_ptr.vmem [resolvable:$true] %s23
      %26 = dma.hbm_to_vmem [thread:$0]  %s22, 128, %s24, [#allocation4]
    $region5: #{tpu_custom_call.1} parent=1 // pred_fallthru
      _
    // Predicated region
    $region6: #{tpu_custom_call.1} parent=1 // pred_check
      _
    $region7: #{tpu_custom_call.1} parent=1 // pred_check_branch
      %28 = sbr.rel (0) target = $region9
    $region8: #{tpu_custom_call.1} parent=1 // pred_region
      %30 = vsyncadd [#allocation6], 0
      %s32 = sshll.u32 %s1, 4
      %s33 = int_to_ptr.hbm [resolvable:$true] %s32
      %s34 = sshll.u32 [#allocation5], 4
      %s35 = int_to_ptr.vmem [resolvable:$true] %s34
      %37 = dma.hbm_to_vmem [thread:$0]  %s33, 128, %s35, [#allocation6]
    $region9: #{tpu_custom_call.1} parent=1 // pred_fallthru
      _
    // Predicated region
    $region10: #{tpu_custom_call.1} parent=1 // pred_check
      _
    $region11: #{tpu_custom_call.1} parent=1 // pred_check_branch
      %39 = sbr.rel (0) target = $region13
    $region12: #{tpu_custom_call.1} parent=1 // pred_region
      %41 = vsyncadd [#allocation6], 0
      %s42 = sshll.u32 %s2, 4
      %s43 = int_to_ptr.hbm [resolvable:$true] %s42
      %s44 = sshll.u32 [#allocation7], 4
      %s45 = int_to_ptr.vmem [resolvable:$true] %s44
      %50 = dma.hbm_to_vmem [thread:$0]  %s43, 256, %s45, [#allocation6], 128, 128, 8
    $region13: #{tpu_custom_call.1} parent=1 // pred_fallthru
      _
    // Predicated region
    $region14: #{tpu_custom_call.1} parent=1 // pred_check
      _
    $region15: #{tpu_custom_call.1} parent=1 // pred_check_branch
      %52 = sbr.rel (0) target = $region17
    $region16: #{tpu_custom_call.1} parent=1 // pred_region
      %54 = vsyncadd [#allocation9], 0
      %s56 = sshll.u32 %s3, 4
      %s57 = int_to_ptr.hbm [resolvable:$true] %s56
      %s58 = sshll.u32 [#allocation8], 4
      %s59 = int_to_ptr.vmem [resolvable:$true] %s58
      %61 = dma.hbm_to_vmem [thread:$0]  %s57, 128, %s59, [#allocation9]
    $region17: #{tpu_custom_call.1} parent=1 // pred_fallthru
      _
    // Predicated region
    $region18: #{tpu_custom_call.1} parent=1 // pred_check
      _
    $region19: #{tpu_custom_call.1} parent=1 // pred_check_branch
      %63 = sbr.rel (0) target = $region21
    $region20: #{tpu_custom_call.1} parent=1 // pred_region
      _
    $region21: #{tpu_custom_call.1} parent=1 // pred_fallthru
      _
    // Predicated region
    $region22: #{tpu_custom_call.1} parent=1 // pred_check
      _
    $region23: #{tpu_custom_call.1} parent=1 // pred_check_branch
      %65 = sbr.rel (0) target = $region25
    $region24: #{tpu_custom_call.1} parent=1 // pred_region
      _
    $region25: #{tpu_custom_call.1} parent=1 // pred_fallthru
      _
    // Predicated region
    $region26: #{tpu_custom_call.1} parent=1 // pred_check
      _
    $region27: #{tpu_custom_call.1} parent=1 // pred_check_branch
      %67 = sbr.rel (0) target = $region29
    $region28: #{tpu_custom_call.1} parent=1 // pred_region
      _
    $region29: #{tpu_custom_call.1} parent=1 // pred_fallthru
      _
    // Predicated region
    $region30: #{tpu_custom_call.1} parent=1 // pred_check
      _
    $region31: #{tpu_custom_call.1} parent=1 // pred_check_branch
      %69 = sbr.rel (0) target = $region33
    $region32: #{tpu_custom_call.1} parent=1 // pred_region
      %71 = dma.done [#allocation4], 128
    $region33: #{tpu_custom_call.1} parent=1 // pred_fallthru
      _
    // Predicated region
    $region34: #{tpu_custom_call.1} parent=1 // pred_check
      _
    $region35: #{tpu_custom_call.1} parent=1 // pred_check_branch
      %73 = sbr.rel (0) target = $region37
    $region36: #{tpu_custom_call.1} parent=1 // pred_region
      %75 = dma.done [#allocation6], 128
    $region37: #{tpu_custom_call.1} parent=1 // pred_fallthru
      _
    // Predicated region
    $region38: #{tpu_custom_call.1} parent=1 // pred_check
      _
    $region39: #{tpu_custom_call.1} parent=1 // pred_check_branch
      %77 = sbr.rel (0) target = $region41
    $region40: #{tpu_custom_call.1} parent=1 // pred_region
      %79 = dma.done [#allocation6], 256
    $region41: #{tpu_custom_call.1} parent=1 // pred_fallthru
      _
    // Predicated region
    $region42: #{tpu_custom_call.1} parent=1 // pred_check
      _
    $region43: #{tpu_custom_call.1} parent=1 // pred_check_branch
      %81 = sbr.rel (0) target = $region45
    $region44: #{tpu_custom_call.1} parent=1 // pred_region
      %83 = dma.done [#allocation9], 128
    $region45: #{tpu_custom_call.1} parent=1 // pred_fallthru
      _
    %v84 = vld [vmem:[#allocation3] sm:$0xff]
    %v85 = vld [vmem:[#allocation7] sm:$0xff]
    %v86 = vld [vmem:[#allocation7 + $0x8] sm:$0xff]
    %v87 = vld [vmem:[#allocation5] sm:$0xff]
    %v88 = vld [vmem:[#allocation8] sm:$0xff]
    %vm89 = vcmask 64512
    %v91 = vsel %vm89, %v87, 0
    %93 = vmatpush.msra.mxu0 0.0
    %94 = vmatpush.msra.mxu0 0.0
    %95 = vmatpush.msra.mxu0 0.0
    %96 = vmatpush.msra.mxu0 0.0
    %97 = vmatpush.msra.mxu0 0.0
    %98 = vmatpush.msra.mxu0 0.0
    %99 = vmatpush.msra.mxu0 0.0
    %100 = vmatpush.msra.mxu0 0.0
    %101 = vmatpush.msra.mxu0 0.0
    %102 = vmatpush.msra.mxu0 0.0
    %103 = vmatpush.msra.mxu0 0.0
    %104 = vmatpush.msra.mxu0 0.0
    %105 = vmatpush.msra.mxu0 0.0
    %106 = vmatpush.msra.mxu0 0.0
    %107 = vmatpush.msra.mxu0 0.0
    %108 = vmatpush.msra.mxu0 %v88
    %109 = vmatmul.f32.gmra.mxu0 %v91
    %v110 = vpop.f32.mrf.mxu0
    %v111 = vadd.f32 0.0, %v110
    %112 = vdwg.mxu0
    %vm113 = vcmask 130048
    %v115 = vsel %vm113, %v84, 0
    %117 = vmatpush.msra.mxu0 0.0
    %118 = vmatpush.msra.mxu0 0.0
    %119 = vmatpush.msra.mxu0 0.0
    %120 = vmatpush.msra.mxu0 0.0
    %121 = vmatpush.msra.mxu0 0.0
    %122 = vmatpush.msra.mxu0 0.0
    %123 = vmatpush.msra.mxu0 0.0
    %124 = vmatpush.msra.mxu0 0.0
    %125 = vmatpush.msra.mxu0 0.0
    %126 = vmatpush.msra.mxu0 0.0
    %127 = vmatpush.msra.mxu0 0.0
    %128 = vmatpush.msra.mxu0 0.0
    %129 = vmatpush.msra.mxu0 0.0
    %130 = vmatpush.msra.mxu0 0.0
    %131 = vmatpush.msra.mxu0 %v86
    %132 = vmatpush.msra.mxu0 %v85
    %133 = vmatmul.f32.gmra.mxu0 %v115
    %v134 = vpop.f32.mrf.mxu0
    %v135 = vadd.f32 %v111, %v134
    %136 = vdwg.mxu0
    %v137 = vld [vmem:[%s4] sm:$0x1]
    %v139 = vperm.slane %v137, 0
    %v141 = vadd.f32 %v135, %v139
    %v142 = vmax.f32 %v141, 0.0
    %v143 = vld [vmem:[%s5] sm:$0x1]
    %v145 = vperm.slane %v143, 0
    %v147 = vmul.f32 %v142, %v145
    %vm148 = vcmask 261120
    %v149 = vsel %vm148, %v147, 0.0
    %150 = vadd.xlane.f32.xlu0 %v149
    %v151 = vpop.xlane.xlu0 %150
    %s152 = sld [smem:[#allocation2]]
    %v153 = vstv %s152
    %v154 = vadd.f32 %v151, %v153
    %vm155 = vcmask 7168
    %156 = vst.msk [vmem:[%s7] sm:$0xff] %vm155, %v154
    // Predicated region
    $region46: #{tpu_custom_call.1} parent=1 // pred_check
      _
    $region47: #{tpu_custom_call.1} parent=1 // pred_check_branch
      %158 = sbr.rel (0) target = $region49
    $region48: #{tpu_custom_call.1} parent=1 // pred_region
      _
    $region49: #{tpu_custom_call.1} parent=1 // pred_fallthru
      _
    // Predicated region
    $region50: #{tpu_custom_call.1} parent=1 // pred_check
      _
    $region51: #{tpu_custom_call.1} parent=1 // pred_check_branch
      %160 = sbr.rel (0) target = $region53
    $region52: #{tpu_custom_call.1} parent=1 // pred_region
      _
    $region53: #{tpu_custom_call.1} parent=1 // pred_fallthru
      _
    %161 = vsyncpa [#allocation4], 1
    %162 = vsyncpa [#allocation6], 1
    %163 = vsyncpa [#allocation9], 1

</llo_original>
